<compile_context>
chip_gen: v6e
topology: v6e:2x2x1
jax: 0.10.0
libtpu: 0.0.40
codegen_flags: <defaults>
</compile_context>

<pallas_src>
import jax
import jax.numpy as jnp
from jax.experimental import pallas as pl
from jax.experimental.pallas import tpu as pltpu

N, DEPTH, CH, H, W = 2, 4, 8, 16, 16   # batch, in-channels, out-channels, spatial
K = 3                                   # conv kernel size (padding=1, stride=1)


# ----------------------------- Pallas kernel -------------------------------- #

def _make_kernel(h):
    """Build the fused resblock kernel for images of height `h` (static)."""

    def kernel(x_ref, w2_ref, b2_ref, w3_ref, b3_ref, wsc_ref, o_ref):
        """Lane-dense (n*h, w*c) layout.

           x_ref   : (n*h, w*cin)          un-activated input
           w2_ref  : (3, w*cin,  w*cmid)   per-kh W-Toeplitz conv2 weights
           b2_ref  : (1, w*cmid)           conv2 bias tiled across W
           w3_ref  : (3, w*cmid, w*cout)   per-kh W-Toeplitz conv3 weights
           b3_ref  : (1, w*cout)           (b3 + 1.0*b_shortcut) tiled across W
           wsc_ref : (w*cin, w*cout)       block-diag 1x1 shortcut weight
           o_ref   : (n*h, w*cout)
        """
        x = x_ref[...]
        nh = x.shape[0]

        def conv3x3(v, w_stack, width):
            # Three independent MXU dots on the same activation (pipeline
            # back-to-back); the H halo is applied to the RESULTS with XLU
            # sublane rolls + per-image boundary masks (VPU), not extra dots.
            mid = jnp.dot(v, w_stack[1], preferred_element_type=jnp.float32)
            top = jnp.dot(v, w_stack[0], preferred_element_type=jnp.float32)  # uses row r-1
            bot = jnp.dot(v, w_stack[2], preferred_element_type=jnp.float32)  # uses row r+1

            ri = jax.lax.broadcasted_iota(jnp.int32, (nh, width), 0) % h
            top_sh = pltpu.roll(top, shift=1, axis=0)        # row r <- row r-1
            bot_sh = pltpu.roll(bot, shift=nh - 1, axis=0)   # row r <- row r+1
            top_sh = jnp.where(ri == 0, 0.0, top_sh)         # zero-pad above each image
            bot_sh = jnp.where(ri == h - 1, 0.0, bot_sh)     # zero-pad below each image
            return mid + top_sh + bot_sh

        # Shortcut 1x1 conv on the ORIGINAL x: independent dot, schedules freely.
        sc = jnp.dot(x, wsc_ref[...], preferred_element_type=jnp.float32)

        xr = jnp.maximum(x, 0.0)                              # ACT(bn1(x)); bn1 identity
        y = conv3x3(xr, w2_ref, b2_ref.shape[-1])
        y = jnp.maximum(y + b2_ref[...], 0.0)                 # ACT(bn2(conv2)+b2)

        out = conv3x3(y, w3_ref, b3_ref.shape[-1]) + b3_ref[...] + sc
        o_ref[...] = out                                      # 128-lane dense store

    return kernel


# --------------------- one-time weight/layout preparation ------------------- #

def _toeplitz_weight_stack(wk, w_spatial):
    """HWIO (K,K,cin,cout) conv weight -> (K, w*cin, w*cout) per-kh W-Toeplitz.

    For slice kh: row = m*cin + c (source W position m), col = j*cout + o
    (output W position j); entry = wk[kh, m-j+1, c, o] when 0 <= m-j+1 < K
    else 0 (W zero-padding absorbed into structural zeros).
    """
    K_h, K_w, cin, cout = wk.shape
    m = jnp.arange(w_spatial)[:, None]
    j = jnp.arange(w_spatial)[None, :]
    kw = m - j + 1
    valid = (kw >= 0) & (kw < K_w)
    kw_c = jnp.clip(kw, 0, K_w - 1)
    picked = wk[:, kw_c, :, :]                                  # (K_h, m, j, cin, cout)
    picked = jnp.where(valid[None, :, :, None, None], picked, 0.0)
    big = jnp.transpose(picked, (0, 1, 3, 2, 4))                # (K_h, m, cin, j, cout)
    return big.reshape(K_h, w_spatial * cin, w_spatial * cout)


def _blockdiag_weight(wsc, w_spatial):
    """1x1-conv weight (cin, cout) -> (w*cin, w*cout) block-diagonal matrix."""
    eye = jnp.eye(w_spatial, dtype=wsc.dtype)
    big = jnp.einsum('mj,co->mcjo', eye, wsc)                   # (m, cin, j, cout)
    return big.reshape(w_spatial * wsc.shape[0], w_spatial * wsc.shape[1])


def prepare_params(params, w):
    """Model-load-time layout transforms (NOT part of the per-call forward)."""
    w2, b2, w3, b3, wsc, bsc = params
    cmid = w2.shape[-1]
    cout = w3.shape[-1]
    w2s = _toeplitz_weight_stack(w2, w)                         # (3, w*cin,  w*cmid)
    w3s = _toeplitz_weight_stack(w3, w)                         # (3, w*cmid, w*cout)
    wscbig = _blockdiag_weight(wsc, w)                          # (w*cin, w*cout)
    b2big = jnp.tile(b2.reshape(1, cmid), (1, w))               # (1, w*cmid)
    b3big = jnp.tile((b3 + 1.0 * bsc).reshape(1, cout), (1, w))  # (1, w*cout)
    return (w2s, b2big, w3s, b3big, wscbig)


# --------------------------------- forward ----------------------------------- #

@jax.jit
def resblock_forward(x_nchw, prepped):
    """x_nchw: (N, DEPTH, H, W) float32 -> (N, CH, H, W) float32."""
    w2s, b2big, w3s, b3big, wscbig = prepped
    n, cin, h, w = x_nchw.shape
    cout = w3s.shape[-1] // w

    # NCHW -> lane-dense (n*h, w*cin) "row image" layout.
    x2d = (jnp.transpose(x_nchw, (0, 2, 3, 1)).astype(jnp.float32)
           .reshape(n * h, w * cin))

    vmem = pltpu.MemorySpace.VMEM
    out2d = pl.pallas_call(
        _make_kernel(h),
        out_shape=jax.ShapeDtypeStruct((n * h, w * cout), jnp.float32),
        in_specs=[pl.BlockSpec(memory_space=vmem) for _ in range(6)],
        out_specs=pl.BlockSpec(memory_space=vmem),
    )(x2d, w2s, b2big, w3s, b3big, wscbig)

    # (n*h, w*cout) -> NHWC -> NCHW to match the PyTorch module's output layout.
    # (Skip this if the consumer can take NHWC / the lane-dense slab directly.)
    return jnp.transpose(out2d.reshape(n, h, w, cout), (0, 3, 1, 2))


# ------------------------------ reference ----------------------------------- #

def reference_forward(x_nchw, params):
    """Pure-JAX reference using lax conv, mirroring the PyTorch module."""
    w2, b2, w3, b3, wsc, bsc = params
    x = jnp.transpose(x_nchw, (0, 2, 3, 1)).astype(jnp.float32)
    dn = ('NHWC', 'HWIO', 'NHWC')
    out = jnp.maximum(x, 0.0)
    out = jax.lax.conv_general_dilated(out, w2, (1, 1), ((1, 1), (1, 1)),
                                       dimension_numbers=dn) + b2.reshape(1, 1, 1, -1)
    out = jnp.maximum(out, 0.0)
    out = jax.lax.conv_general_dilated(out, w3, (1, 1), ((1, 1), (1, 1)),
                                       dimension_numbers=dn) + b3.reshape(1, 1, 1, -1)
    sc = jax.lax.conv_general_dilated(x, wsc.reshape(1, 1, DEPTH, CH), (1, 1),
                                      ((0, 0), (0, 0)),
                                      dimension_numbers=dn) + bsc.reshape(1, 1, 1, -1)
    out = out + 1.0 * sc
    return jnp.transpose(out, (0, 3, 1, 2))


def init_params(key):
    k1, k2, k3, k4, k5, k6 = jax.random.split(key, 6)
    w2 = 0.1 * jax.random.normal(k1, (K, K, DEPTH, CH), jnp.float32)   # HWIO
    b2 = 0.1 * jax.random.normal(k2, (CH,), jnp.float32)
    w3 = 0.1 * jax.random.normal(k3, (K, K, CH, CH), jnp.float32)      # HWIO
    b3 = 0.1 * jax.random.normal(k4, (CH,), jnp.float32)
    wsc = 0.1 * jax.random.normal(k5, (DEPTH, CH), jnp.float32)        # 1x1 conv
    bsc = 0.1 * jax.random.normal(k6, (CH,), jnp.float32)
    return (w2, b2, w3, b3, wsc, bsc)


if __name__ == "__main__":
    key = jax.random.PRNGKey(0)
    kx, kp = jax.random.split(key)
    x = jax.random.normal(kx, (N, DEPTH, H, W), jnp.float32)   # PyTorch NCHW input
    params = init_params(kp)

    # One-time (load-time) weight layout prep, outside the per-call forward.
    prepped = jax.block_until_ready(prepare_params(params, W))

    out = resblock_forward(x, prepped)
    out = jax.block_until_ready(out)

    ref = jax.block_until_ready(reference_forward(x, params))
    assert out.shape == (N, CH, H, W)
    assert jnp.allclose(out, ref, atol=1e-4, rtol=1e-4), "mismatch vs reference"

    print("KERNEL_OK")
</pallas_src>

<mosaic_0001>
module attributes {stable_mosaic.version = 11 : i64} {
  func.func @kernel(%arg0: memref<32x64xf32, #tpu.memory_space<vmem>>, %arg1: memref<3x64x128xf32, #tpu.memory_space<vmem>>, %arg2: memref<1x128xf32, #tpu.memory_space<vmem>>, %arg3: memref<3x128x128xf32, #tpu.memory_space<vmem>>, %arg4: memref<1x128xf32, #tpu.memory_space<vmem>>, %arg5: memref<64x128xf32, #tpu.memory_space<vmem>>, %arg6: memref<32x128xf32, #tpu.memory_space<vmem>>) attributes {dimension_semantics = [], scalar_prefetch = 0 : i64, scratch_operands = 0 : i64, tpu.core_type = #tpu.core_type<tc>} {
    %c0 = arith.constant 0 : index
    %c0_0 = arith.constant 0 : index
    %0 = vector.load %arg0[%c0, %c0_0] : memref<32x64xf32, #tpu.memory_space<vmem>>, vector<32x64xf32>
    %c0_1 = arith.constant 0 : index
    %c0_2 = arith.constant 0 : index
    %1 = vector.load %arg5[%c0_1, %c0_2] : memref<64x128xf32, #tpu.memory_space<vmem>>, vector<64x128xf32>
    %cst = arith.constant dense<0.000000e+00> : vector<32x128xf32>
    %2 = tpu.matmul %0, %1, %cst {dimension_numbers = #tpu.dot_dimension_numbers<[1], [0], [0], [1], [0, 0, 1, 1], [], []>} : vector<32x64xf32>, vector<64x128xf32>, vector<32x128xf32> -> vector<32x128xf32>
    %cst_3 = arith.constant 0.000000e+00 : f32
    %3 = vector.broadcast %cst_3 : f32 to vector<32x64xf32>
    %4 = arith.maximumf %0, %3 : vector<32x64xf32>
    %c1 = arith.constant 1 : index
    %c0_4 = arith.constant 0 : index
    %c0_5 = arith.constant 0 : index
    %5 = vector.load %arg1[%c1, %c0_4, %c0_5] : memref<3x64x128xf32, #tpu.memory_space<vmem>>, vector<1x64x128xf32>
    %6 = vector.shape_cast %5 : vector<1x64x128xf32> to vector<64x128xf32>
    %cst_6 = arith.constant dense<0.000000e+00> : vector<32x128xf32>
    %7 = tpu.matmul %4, %6, %cst_6 {dimension_numbers = #tpu.dot_dimension_numbers<[1], [0], [0], [1], [0, 0, 1, 1], [], []>} : vector<32x64xf32>, vector<64x128xf32>, vector<32x128xf32> -> vector<32x128xf32>
    %c0_7 = arith.constant 0 : index
    %c0_8 = arith.constant 0 : index
    %c0_9 = arith.constant 0 : index
    %8 = vector.load %arg1[%c0_7, %c0_8, %c0_9] : memref<3x64x128xf32, #tpu.memory_space<vmem>>, vector<1x64x128xf32>
    %9 = vector.shape_cast %8 : vector<1x64x128xf32> to vector<64x128xf32>
    %cst_10 = arith.constant dense<0.000000e+00> : vector<32x128xf32>
    %10 = tpu.matmul %4, %9, %cst_10 {dimension_numbers = #tpu.dot_dimension_numbers<[1], [0], [0], [1], [0, 0, 1, 1], [], []>} : vector<32x64xf32>, vector<64x128xf32>, vector<32x128xf32> -> vector<32x128xf32>
    %c2 = arith.constant 2 : index
    %c0_11 = arith.constant 0 : index
    %c0_12 = arith.constant 0 : index
    %11 = vector.load %arg1[%c2, %c0_11, %c0_12] : memref<3x64x128xf32, #tpu.memory_space<vmem>>, vector<1x64x128xf32>
    %12 = vector.shape_cast %11 : vector<1x64x128xf32> to vector<64x128xf32>
    %cst_13 = arith.constant dense<0.000000e+00> : vector<32x128xf32>
    %13 = tpu.matmul %4, %12, %cst_13 {dimension_numbers = #tpu.dot_dimension_numbers<[1], [0], [0], [1], [0, 0, 1, 1], [], []>} : vector<32x64xf32>, vector<64x128xf32>, vector<32x128xf32> -> vector<32x128xf32>
    %14 = tpu.iota {dimensions = array<i32: 0>} : vector<32x128xi32>
    %c16_i32 = arith.constant 16 : i32
    %c0_i32 = arith.constant 0 : i32
    %15 = arith.cmpi eq, %c16_i32, %c0_i32 : i32
    %c1_i32 = arith.constant 1 : i32
    %16 = arith.select %15, %c1_i32, %c16_i32 : i32
    %17 = vector.broadcast %16 : i32 to vector<32x128xi32>
    %18 = arith.remsi %14, %17 : vector<32x128xi32>
    %c0_i32_14 = arith.constant 0 : i32
    %19 = vector.broadcast %c0_i32_14 : i32 to vector<32x128xi32>
    %20 = arith.cmpi ne, %18, %19 : vector<32x128xi32>
    %c0_i32_15 = arith.constant 0 : i32
    %21 = vector.broadcast %c0_i32_15 : i32 to vector<32x128xi32>
    %22 = arith.cmpi slt, %18, %21 : vector<32x128xi32>
    %c0_i32_16 = arith.constant 0 : i32
    %23 = arith.cmpi slt, %16, %c0_i32_16 : i32
    %24 = vector.broadcast %23 : i1 to vector<32x128xi1>
    %25 = vector.broadcast %24 : vector<32x128xi1> to vector<32x128xi1>
    %26 = arith.xori %22, %25 : vector<32x128xi1>
    %27 = arith.andi %26, %20 : vector<32x128xi1>
    %28 = vector.broadcast %16 : i32 to vector<32x128xi32>
    %29 = arith.addi %18, %28 : vector<32x128xi32>
    %30 = arith.select %27, %29, %18 : vector<32x128xi1>, vector<32x128xi32>
    %c1_i32_17 = arith.constant 1 : i32
    %31 = tpu.dynamic_rotate %10 by %c1_i32_17 dim 0 : vector<32x128xf32>, i32 -> vector<32x128xf32>
    %c31_i32 = arith.constant 31 : i32
    %32 = tpu.dynamic_rotate %13 by %c31_i32 dim 0 : vector<32x128xf32>, i32 -> vector<32x128xf32>
    %c0_i32_18 = arith.constant 0 : i32
    %33 = vector.broadcast %c0_i32_18 : i32 to vector<32x128xi32>
    %34 = arith.cmpi eq, %30, %33 : vector<32x128xi32>
    %cst_19 = arith.constant 0.000000e+00 : f32
    %35 = vector.broadcast %cst_19 : f32 to vector<32x128xf32>
    %36 = arith.select %34, %35, %31 : vector<32x128xi1>, vector<32x128xf32>
    %c15_i32 = arith.constant 15 : i32
    %37 = vector.broadcast %c15_i32 : i32 to vector<32x128xi32>
    %38 = arith.cmpi eq, %30, %37 : vector<32x128xi32>
    %cst_20 = arith.constant 0.000000e+00 : f32
    %39 = vector.broadcast %cst_20 : f32 to vector<32x128xf32>
    %40 = arith.select %38, %39, %32 : vector<32x128xi1>, vector<32x128xf32>
    %41 = arith.addf %7, %36 : vector<32x128xf32>
    %42 = arith.addf %41, %40 : vector<32x128xf32>
    %c0_21 = arith.constant 0 : index
    %c0_22 = arith.constant 0 : index
    %43 = vector.load %arg2[%c0_21, %c0_22] : memref<1x128xf32, #tpu.memory_space<vmem>>, vector<1x128xf32>
    %44 = vector.broadcast %43 : vector<1x128xf32> to vector<32x128xf32>
    %45 = arith.addf %42, %44 : vector<32x128xf32>
    %cst_23 = arith.constant 0.000000e+00 : f32
    %46 = vector.broadcast %cst_23 : f32 to vector<32x128xf32>
    %47 = arith.maximumf %45, %46 : vector<32x128xf32>
    %c1_24 = arith.constant 1 : index
    %c0_25 = arith.constant 0 : index
    %c0_26 = arith.constant 0 : index
    %48 = vector.load %arg3[%c1_24, %c0_25, %c0_26] : memref<3x128x128xf32, #tpu.memory_space<vmem>>, vector<1x128x128xf32>
    %49 = vector.shape_cast %48 : vector<1x128x128xf32> to vector<128x128xf32>
    %cst_27 = arith.constant dense<0.000000e+00> : vector<32x128xf32>
    %50 = tpu.matmul %47, %49, %cst_27 {dimension_numbers = #tpu.dot_dimension_numbers<[1], [0], [0], [1], [0, 0, 1, 1], [], []>} : vector<32x128xf32>, vector<128x128xf32>, vector<32x128xf32> -> vector<32x128xf32>
    %c0_28 = arith.constant 0 : index
    %c0_29 = arith.constant 0 : index
    %c0_30 = arith.constant 0 : index
    %51 = vector.load %arg3[%c0_28, %c0_29, %c0_30] : memref<3x128x128xf32, #tpu.memory_space<vmem>>, vector<1x128x128xf32>
    %52 = vector.shape_cast %51 : vector<1x128x128xf32> to vector<128x128xf32>
    %cst_31 = arith.constant dense<0.000000e+00> : vector<32x128xf32>
    %53 = tpu.matmul %47, %52, %cst_31 {dimension_numbers = #tpu.dot_dimension_numbers<[1], [0], [0], [1], [0, 0, 1, 1], [], []>} : vector<32x128xf32>, vector<128x128xf32>, vector<32x128xf32> -> vector<32x128xf32>
    %c2_32 = arith.constant 2 : index
    %c0_33 = arith.constant 0 : index
    %c0_34 = arith.constant 0 : index
    %54 = vector.load %arg3[%c2_32, %c0_33, %c0_34] : memref<3x128x128xf32, #tpu.memory_space<vmem>>, vector<1x128x128xf32>
    %55 = vector.shape_cast %54 : vector<1x128x128xf32> to vector<128x128xf32>
    %cst_35 = arith.constant dense<0.000000e+00> : vector<32x128xf32>
    %56 = tpu.matmul %47, %55, %cst_35 {dimension_numbers = #tpu.dot_dimension_numbers<[1], [0], [0], [1], [0, 0, 1, 1], [], []>} : vector<32x128xf32>, vector<128x128xf32>, vector<32x128xf32> -> vector<32x128xf32>
    %57 = tpu.iota {dimensions = array<i32: 0>} : vector<32x128xi32>
    %c16_i32_36 = arith.constant 16 : i32
    %c0_i32_37 = arith.constant 0 : i32
    %58 = arith.cmpi eq, %c16_i32_36, %c0_i32_37 : i32
    %c1_i32_38 = arith.constant 1 : i32
    %59 = arith.select %58, %c1_i32_38, %c16_i32_36 : i32
    %60 = vector.broadcast %59 : i32 to vector<32x128xi32>
    %61 = arith.remsi %57, %60 : vector<32x128xi32>
    %c0_i32_39 = arith.constant 0 : i32
    %62 = vector.broadcast %c0_i32_39 : i32 to vector<32x128xi32>
    %63 = arith.cmpi ne, %61, %62 : vector<32x128xi32>
    %c0_i32_40 = arith.constant 0 : i32
    %64 = vector.broadcast %c0_i32_40 : i32 to vector<32x128xi32>
    %65 = arith.cmpi slt, %61, %64 : vector<32x128xi32>
    %c0_i32_41 = arith.constant 0 : i32
    %66 = arith.cmpi slt, %59, %c0_i32_41 : i32
    %67 = vector.broadcast %66 : i1 to vector<32x128xi1>
    %68 = vector.broadcast %67 : vector<32x128xi1> to vector<32x128xi1>
    %69 = arith.xori %65, %68 : vector<32x128xi1>
    %70 = arith.andi %69, %63 : vector<32x128xi1>
    %71 = vector.broadcast %59 : i32 to vector<32x128xi32>
    %72 = arith.addi %61, %71 : vector<32x128xi32>
    %73 = arith.select %70, %72, %61 : vector<32x128xi1>, vector<32x128xi32>
    %c1_i32_42 = arith.constant 1 : i32
    %74 = tpu.dynamic_rotate %53 by %c1_i32_42 dim 0 : vector<32x128xf32>, i32 -> vector<32x128xf32>
    %c31_i32_43 = arith.constant 31 : i32
    %75 = tpu.dynamic_rotate %56 by %c31_i32_43 dim 0 : vector<32x128xf32>, i32 -> vector<32x128xf32>
    %c0_i32_44 = arith.constant 0 : i32
    %76 = vector.broadcast %c0_i32_44 : i32 to vector<32x128xi32>
    %77 = arith.cmpi eq, %73, %76 : vector<32x128xi32>
    %cst_45 = arith.constant 0.000000e+00 : f32
    %78 = vector.broadcast %cst_45 : f32 to vector<32x128xf32>
    %79 = arith.select %77, %78, %74 : vector<32x128xi1>, vector<32x128xf32>
    %c15_i32_46 = arith.constant 15 : i32
    %80 = vector.broadcast %c15_i32_46 : i32 to vector<32x128xi32>
    %81 = arith.cmpi eq, %73, %80 : vector<32x128xi32>
    %cst_47 = arith.constant 0.000000e+00 : f32
    %82 = vector.broadcast %cst_47 : f32 to vector<32x128xf32>
    %83 = arith.select %81, %82, %75 : vector<32x128xi1>, vector<32x128xf32>
    %84 = arith.addf %50, %79 : vector<32x128xf32>
    %85 = arith.addf %84, %83 : vector<32x128xf32>
    %c0_48 = arith.constant 0 : index
    %c0_49 = arith.constant 0 : index
    %86 = vector.load %arg4[%c0_48, %c0_49] : memref<1x128xf32, #tpu.memory_space<vmem>>, vector<1x128xf32>
    %87 = vector.broadcast %86 : vector<1x128xf32> to vector<32x128xf32>
    %88 = arith.addf %85, %87 : vector<32x128xf32>
    %89 = arith.addf %88, %2 : vector<32x128xf32>
    %c0_50 = arith.constant 0 : index
    %c0_51 = arith.constant 0 : index
    %90 = vector.load %arg6[%c0_50, %c0_51] : memref<32x128xf32, #tpu.memory_space<vmem>>, vector<32x128xf32>
    tpu.vector_store %arg6[%c0_50, %c0_51], %89 {strides = array<i32>} : memref<32x128xf32, #tpu.memory_space<vmem>>, vector<32x128xf32>,
    return
  }
}

</mosaic_0001>

<llo_original>
// kernel: resblock_forward.1
$region0: #{resblock_forward.1}
  #allocation0 [shape = 'u32[]', space=smem, size = 0x4, offset = 0x4, fixed_abs, tag = 'smem constant byte address 0x4 - core index']
  #allocation1 [shape = 'u32[144,128]{1,0:T(1,128)}', space=vmem, size = 0x12000, scoped, tag = 'internal scratch']
  %s0 = inlined_call_operand.vmem [shape: f32[32,64], index: 0, kind: input, shape index: {}]
  %s1 = inlined_call_operand.hbm [shape: f32[3,64,128], index: 1, kind: input, shape index: {}]
  %s2 = inlined_call_operand.vmem [shape: f32[1,128], index: 2, kind: input, shape index: {}]
  %s3 = inlined_call_operand.vmem [shape: f32[3,128,128], index: 3, kind: input, shape index: {}]
  %s4 = inlined_call_operand.vmem [shape: f32[1,128], index: 4, kind: input, shape index: {}]
  %s5 = inlined_call_operand.vmem [shape: f32[64,128], index: 5, kind: input, shape index: {}]
  %s6 = inlined_call_operand.vmem [shape: f32[32,128], index: 6, kind: output, shape index: {}]
  %s7 = sld [smem:[#allocation0]]
  $region38: #{resblock_forward.1} parent=0
    _
  %s9 = ssub.s32 1, %s7
  %s10 = scalar_select 0, %s9, %s7
  $region1: #{resblock_forward.1} parent=0
    #allocation2 [shape = 'u8[98304]{0}', space=vmem, size = 0x18000, scoped, tag = 'input window, operand 1, single buffered']
    #allocation3 [shape = 's32[1]{0}', space=sflag, size = 0x4, scoped, tag = 'scoped memory for resblock_forward.1']
    %11 = vsyncpa [#allocation3], 0
    // Predicated region
    $region2: #{resblock_forward.1} parent=1 // pred_check
      _
    $region3: #{resblock_forward.1} parent=1 // pred_check_branch
      %13 = sbr.rel (0) target = $region5
    $region4: #{resblock_forward.1} parent=1 // pred_region
      _
    $region5: #{resblock_forward.1} parent=1 // pred_fallthru
      _
    // Predicated region
    $region6: #{resblock_forward.1} parent=1 // pred_check
      _
    $region7: #{resblock_forward.1} parent=1 // pred_check_branch
      %15 = sbr.rel (0) target = $region9
    $region8: #{resblock_forward.1} parent=1 // pred_region
      %s17 = ssub.s32 3072, 3072
      %18 = vsyncadd [#allocation3], %s17
      %s19 = sshll.u32 [#allocation2], 4
      %s20 = int_to_ptr.vmem [resolvable:$true] %s19
      %25 = dma.hbm_to_vmem [thread:$0]  %s1, 3072, %s20, [#allocation3], 128, 128, 8
    $region9: #{resblock_forward.1} parent=1 // pred_fallthru
      _
    // Predicated region
    $region10: #{resblock_forward.1} parent=1 // pred_check
      _
    $region11: #{resblock_forward.1} parent=1 // pred_check_branch
      %27 = sbr.rel (0) target = $region13
    $region12: #{resblock_forward.1} parent=1 // pred_region
      _
    $region13: #{resblock_forward.1} parent=1 // pred_fallthru
      _
    // Predicated region
    $region14: #{resblock_forward.1} parent=1 // pred_check
      _
    $region15: #{resblock_forward.1} parent=1 // pred_check_branch
      %29 = sbr.rel (0) target = $region17
    $region16: #{resblock_forward.1} parent=1 // pred_region
      _
    $region17: #{resblock_forward.1} parent=1 // pred_fallthru
      _
    // Predicated region
    $region18: #{resblock_forward.1} parent=1 // pred_check
      _
    $region19: #{resblock_forward.1} parent=1 // pred_check_branch
      %31 = sbr.rel (0) target = $region21
    $region20: #{resblock_forward.1} parent=1 // pred_region
      _
    $region21: #{resblock_forward.1} parent=1 // pred_fallthru
      _
    // Predicated region
    $region22: #{resblock_forward.1} parent=1 // pred_check
      _
    $region23: #{resblock_forward.1} parent=1 // pred_check_branch
      %33 = sbr.rel (0) target = $region25
    $region24: #{resblock_forward.1} parent=1 // pred_region
      _
    $region25: #{resblock_forward.1} parent=1 // pred_fallthru
      _
    // Predicated region
    $region26: #{resblock_forward.1} parent=1 // pred_check
      _
    $region27: #{resblock_forward.1} parent=1 // pred_check_branch
      %35 = sbr.rel (0) target = $region29
    $region28: #{resblock_forward.1} parent=1 // pred_region
      %36 = dma.done [#allocation3], 3072
    $region29: #{resblock_forward.1} parent=1 // pred_fallthru
      _
    %v37 = vld [vmem:[%s0] sm:$0xff]
    %v38 = vld [vmem:[%s0 + $0x8] sm:$0xff]
    %v39 = vld [vmem:[%s0 + $0x10] sm:$0xff]
    %v40 = vld [vmem:[%s0 + $0x18] sm:$0xff]
    %v41 = vld [vmem:[%s5] sm:$0xff]
    %v42 = vld [vmem:[%s5 + $0x8] sm:$0xff]
    %v43 = vld [vmem:[%s5 + $0x10] sm:$0xff]
    %v44 = vld [vmem:[%s5 + $0x18] sm:$0xff]
    %v45 = vld [vmem:[%s5 + $0x20] sm:$0xff]
    %v46 = vld [vmem:[%s5 + $0x28] sm:$0xff]
    %v47 = vld [vmem:[%s5 + $0x30] sm:$0xff]
    %v48 = vld [vmem:[%s5 + $0x38] sm:$0xff]
    %vm49 = vcmask 523264
    %v51 = vsel %vm49, %v37, 0
    %v54 = vsel %vm49, %v38, 0
    %v57 = vsel %vm49, %v39, 0
    %v60 = vsel %vm49, %v40, 0
    %62 = vmatprep.subr.mxu0 0.0
    %63 = vmatpush1.msra.mxu0 0.0
    %64 = vmatprep.subr.mxu0 0.0
    %65 = vmatpush1.msra.mxu0 0.0
    %66 = vmatprep.subr.mxu0 0.0
    %67 = vmatpush1.msra.mxu0 0.0
    %68 = vmatprep.subr.mxu0 0.0
    %69 = vmatpush1.msra.mxu0 0.0
    %70 = vmatprep.subr.mxu0 0.0
    %71 = vmatpush1.msra.mxu0 0.0
    %72 = vmatprep.subr.mxu0 0.0
    %73 = vmatpush1.msra.mxu0 0.0
    %74 = vmatprep.subr.mxu0 0.0
    %75 = vmatpush1.msra.mxu0 0.0
    %76 = vmatprep.subr.mxu0 0.0
    %77 = vmatpush1.msra.mxu0 0.0
    %78 = vmatprep.subr.mxu0 0.0
    %79 = vmatpush1.msra.mxu0 %v48
    %80 = vmatprep.subr.mxu0 0.0
    %81 = vmatpush1.msra.mxu0 %v47
    %82 = vmatprep.subr.mxu0 0.0
    %83 = vmatpush1.msra.mxu0 %v46
    %84 = vmatprep.subr.mxu0 0.0
    %85 = vmatpush1.msra.mxu0 %v45
    %86 = vmatprep.subr.mxu0 0.0
    %87 = vmatpush1.msra.mxu0 %v44
    %88 = vmatprep.subr.mxu0 0.0
    %89 = vmatpush1.msra.mxu0 %v43
    %90 = vmatprep.subr.mxu0 0.0
    %91 = vmatpush1.msra.mxu0 %v42
    %92 = vmatprep.subr.mxu0 0.0
    %93 = vmatpush1.msra.mxu0 %v41
    %94 = vmatprep.subr.mxu0 0.0
    %95 = vmatpush2.msra.mxu0 0.0
    %96 = vmatprep.subr.mxu0 0.0
    %97 = vmatpush2.msra.mxu0 0.0
    %98 = vmatprep.subr.mxu0 0.0
    %99 = vmatpush2.msra.mxu0 0.0
    %100 = vmatprep.subr.mxu0 0.0
    %101 = vmatpush2.msra.mxu0 0.0
    %102 = vmatprep.subr.mxu0 0.0
    %103 = vmatpush2.msra.mxu0 0.0
    %104 = vmatprep.subr.mxu0 0.0
    %105 = vmatpush2.msra.mxu0 0.0
    %106 = vmatprep.subr.mxu0 0.0
    %107 = vmatpush2.msra.mxu0 0.0
    %108 = vmatprep.subr.mxu0 0.0
    %109 = vmatpush2.msra.mxu0 0.0
    %110 = vmatprep.subr.mxu0 0.0
    %111 = vmatpush2.msra.mxu0 0.0
    %112 = vmatprep.subr.mxu0 0.0
    %113 = vmatpush2.msra.mxu0 0.0
    %114 = vmatprep.subr.mxu0 0.0
    %115 = vmatpush2.msra.mxu0 0.0
    %116 = vmatprep.subr.mxu0 0.0
    %117 = vmatpush2.msra.mxu0 0.0
    %118 = vmatprep.subr.mxu0 0.0
    %119 = vmatpush2.msra.mxu0 0.0
    %120 = vmatprep.subr.mxu0 0.0
    %121 = vmatpush2.msra.mxu0 0.0
    %122 = vmatprep.subr.mxu0 0.0
    %123 = vmatpush2.msra.mxu0 0.0
    %124 = vmatprep.subr.mxu0 0.0
    %125 = vmatpush2.msra.mxu0 0.0
    %126 = vmatprep.mubr.f32.mxu0 0.0
    %127 = vmatmul.mubr.f32.gmra.mxu0 %v51
    %v128 = vpop.f32.mrf.mxu0
    %v129 = vadd.f32 0.0, %v128
    %v130 = vpop.f32.mrf.mxu0
    %131 = vmatprep.mubr.f32.mxu0 0.0
    %132 = vmatmul.mubr.f32.gmra.mxu0 %v54
    %v133 = vpop.f32.mrf.mxu0
    %v134 = vadd.f32 0.0, %v133
    %v135 = vpop.f32.mrf.mxu0
    %136 = vmatprep.mubr.f32.mxu0 0.0
    %137 = vmatmul.mubr.f32.gmra.mxu0 %v57
    %v138 = vpop.f32.mrf.mxu0
    %v139 = vadd.f32 0.0, %v138
    %v140 = vpop.f32.mrf.mxu0
    %141 = vmatprep.mubr.f32.mxu0 0.0
    %142 = vmatmul.mubr.f32.gmra.mxu0 %v60
    %v143 = vpop.f32.mrf.mxu0
    %v144 = vadd.f32 0.0, %v143
    %v145 = vpop.f32.mrf.mxu0
    %146 = vdwg.mxu0
    %v147 = vmax.f32 %v37, 0.0
    %v148 = vmax.f32 %v38, 0.0
    %v149 = vmax.f32 %v39, 0.0
    %v150 = vmax.f32 %v40, 0.0
    %s151 = scalar_lea.vmem [#allocation2], 64
    %v152 = vld [vmem:[%s151] sm:$0xff]
    %v153 = vld [vmem:[%s151 + $0x8] sm:$0xff]
    %v154 = vld [vmem:[%s151 + $0x10] sm:$0xff]
    %v155 = vld [vmem:[%s151 + $0x18] sm:$0xff]
    %v156 = vld [vmem:[%s151 + $0x20] sm:$0xff]
    %v157 = vld [vmem:[%s151 + $0x28] sm:$0xff]
    %v158 = vld [vmem:[%s151 + $0x30] sm:$0xff]
    %v159 = vld [vmem:[%s151 + $0x38] sm:$0xff]
    %v160 = vld [vmem:[#allocation2] sm:$0xff]
    %v161 = vld [vmem:[#allocation2 + $0x8] sm:$0xff]
    %v162 = vld [vmem:[#allocation2 + $0x10] sm:$0xff]
    %v163 = vld [vmem:[#allocation2 + $0x18] sm:$0xff]
    %v164 = vld [vmem:[#allocation2 + $0x20] sm:$0xff]
    %v165 = vld [vmem:[#allocation2 + $0x28] sm:$0xff]
    %v166 = vld [vmem:[#allocation2 + $0x30] sm:$0xff]
    %v167 = vld [vmem:[#allocation2 + $0x38] sm:$0xff]
    %v169 = vsel %vm49, %v147, 0
    %v172 = vsel %vm49, %v148, 0
    %v175 = vsel %vm49, %v149, 0
    %v178 = vsel %vm49, %v150, 0
    %180 = vmatprep.subr.mxu0 0.0
    %181 = vmatpush1.msra.mxu0 0.0
    %182 = vmatprep.subr.mxu0 0.0
    %183 = vmatpush1.msra.mxu0 0.0
    %184 = vmatprep.subr.mxu0 0.0
    %185 = vmatpush1.msra.mxu0 0.0
    %186 = vmatprep.subr.mxu0 0.0
    %187 = vmatpush1.msra.mxu0 0.0
    %188 = vmatprep.subr.mxu0 0.0
    %189 = vmatpush1.msra.mxu0 0.0
    %190 = vmatprep.subr.mxu0 0.0
    %191 = vmatpush1.msra.mxu0 0.0
    %192 = vmatprep.subr.mxu0 0.0
    %193 = vmatpush1.msra.mxu0 0.0
    %194 = vmatprep.subr.mxu0 0.0
    %195 = vmatpush1.msra.mxu0 0.0
    %196 = vmatprep.subr.mxu0 0.0
    %197 = vmatpush1.msra.mxu0 %v167
    %198 = vmatprep.subr.mxu0 0.0
    %199 = vmatpush1.msra.mxu0 %v166
    %200 = vmatprep.subr.mxu0 0.0
    %201 = vmatpush1.msra.mxu0 %v165
    %202 = vmatprep.subr.mxu0 0.0
    %203 = vmatpush1.msra.mxu0 %v164
    %204 = vmatprep.subr.mxu0 0.0
    %205 = vmatpush1.msra.mxu0 %v163
    %206 = vmatprep.subr.mxu0 0.0
    %207 = vmatpush1.msra.mxu0 %v162
    %208 = vmatprep.subr.mxu0 0.0
    %209 = vmatpush1.msra.mxu0 %v161
    %210 = vmatprep.subr.mxu0 0.0
    %211 = vmatpush1.msra.mxu0 %v160
    %212 = vmatprep.subr.mxu0 0.0
    %213 = vmatpush2.msra.mxu0 0.0
    %214 = vmatprep.subr.mxu0 0.0
    %215 = vmatpush2.msra.mxu0 0.0
    %216 = vmatprep.subr.mxu0 0.0
    %217 = vmatpush2.msra.mxu0 0.0
    %218 = vmatprep.subr.mxu0 0.0
    %219 = vmatpush2.msra.mxu0 0.0
    %220 = vmatprep.subr.mxu0 0.0
    %221 = vmatpush2.msra.mxu0 0.0
    %222 = vmatprep.subr.mxu0 0.0
    %223 = vmatpush2.msra.mxu0 0.0
    %224 = vmatprep.subr.mxu0 0.0
    %225 = vmatpush2.msra.mxu0 0.0
    %226 = vmatprep.subr.mxu0 0.0
    %227 = vmatpush2.msra.mxu0 0.0
    %228 = vmatprep.subr.mxu0 0.0
    %229 = vmatpush2.msra.mxu0 0.0
    %230 = vmatprep.subr.mxu0 0.0
    %231 = vmatpush2.msra.mxu0 0.0
    %232 = vmatprep.subr.mxu0 0.0
    %233 = vmatpush2.msra.mxu0 0.0
    %234 = vmatprep.subr.mxu0 0.0
    %235 = vmatpush2.msra.mxu0 0.0
    %236 = vmatprep.subr.mxu0 0.0
    %237 = vmatpush2.msra.mxu0 0.0
    %238 = vmatprep.subr.mxu0 0.0
    %239 = vmatpush2.msra.mxu0 0.0
    %240 = vmatprep.subr.mxu0 0.0
    %241 = vmatpush2.msra.mxu0 0.0
    %242 = vmatprep.subr.mxu0 0.0
    %243 = vmatpush2.msra.mxu0 0.0
    %244 = vmatprep.mubr.f32.mxu0 0.0
    %245 = vmatmul.mubr.f32.gmra.mxu0 %v169
    %v246 = vpop.f32.mrf.mxu0
    %v247 = vadd.f32 0.0, %v246
    %v248 = vpop.f32.mrf.mxu0
    %249 = vmatprep.mubr.f32.mxu0 0.0
    %250 = vmatmul.mubr.f32.gmra.mxu0 %v172
    %v251 = vpop.f32.mrf.mxu0
    %v252 = vadd.f32 0.0, %v251
    %v253 = vpop.f32.mrf.mxu0
    %254 = vmatprep.mubr.f32.mxu0 0.0
    %255 = vmatmul.mubr.f32.gmra.mxu0 %v175
    %v256 = vpop.f32.mrf.mxu0
    %v257 = vadd.f32 0.0, %v256
    %v258 = vpop.f32.mrf.mxu0
    %259 = vmatprep.mubr.f32.mxu0 0.0
    %260 = vmatmul.mubr.f32.gmra.mxu0 %v178
    %v261 = vpop.f32.mrf.mxu0
    %v262 = vadd.f32 0.0, %v261
    %v263 = vpop.f32.mrf.mxu0
    %264 = vdwg.mxu0
    %s265 = scalar_lea.vmem [#allocation2], 128
    %v266 = vld [vmem:[%s265] sm:$0xff]
    %v267 = vld [vmem:[%s265 + $0x8] sm:$0xff]
    %v268 = vld [vmem:[%s265 + $0x10] sm:$0xff]
    %v269 = vld [vmem:[%s265 + $0x18] sm:$0xff]
    %v270 = vld [vmem:[%s265 + $0x20] sm:$0xff]
    %v271 = vld [vmem:[%s265 + $0x28] sm:$0xff]
    %v272 = vld [vmem:[%s265 + $0x30] sm:$0xff]
    %v273 = vld [vmem:[%s265 + $0x38] sm:$0xff]
    %274 = vmatprep.subr.mxu0 0.0
    %275 = vmatpush1.msra.mxu0 0.0
    %276 = vmatprep.subr.mxu0 0.0
    %277 = vmatpush1.msra.mxu0 0.0
    %278 = vmatprep.subr.mxu0 0.0
    %279 = vmatpush1.msra.mxu0 0.0
    %280 = vmatprep.subr.mxu0 0.0
    %281 = vmatpush1.msra.mxu0 0.0
    %282 = vmatprep.subr.mxu0 0.0
    %283 = vmatpush1.msra.mxu0 0.0
    %284 = vmatprep.subr.mxu0 0.0
    %285 = vmatpush1.msra.mxu0 0.0
    %286 = vmatprep.subr.mxu0 0.0
    %287 = vmatpush1.msra.mxu0 0.0
    %288 = vmatprep.subr.mxu0 0.0
    %289 = vmatpush1.msra.mxu0 0.0
    %290 = vmatprep.subr.mxu0 0.0
    %291 = vmatpush1.msra.mxu0 %v273
    %292 = vmatprep.subr.mxu0 0.0
    %293 = vmatpush1.msra.mxu0 %v272
    %294 = vmatprep.subr.mxu0 0.0
    %295 = vmatpush1.msra.mxu0 %v271
    %296 = vmatprep.subr.mxu0 0.0
    %297 = vmatpush1.msra.mxu0 %v270
    %298 = vmatprep.subr.mxu0 0.0
    %299 = vmatpush1.msra.mxu0 %v269
    %300 = vmatprep.subr.mxu0 0.0
    %301 = vmatpush1.msra.mxu0 %v268
    %302 = vmatprep.subr.mxu0 0.0
    %303 = vmatpush1.msra.mxu0 %v267
    %304 = vmatprep.subr.mxu0 0.0
    %305 = vmatpush1.msra.mxu0 %v266
    %306 = vmatprep.subr.mxu0 0.0
    %307 = vmatpush2.msra.mxu0 0.0
    %308 = vmatprep.subr.mxu0 0.0
    %309 = vmatpush2.msra.mxu0 0.0
    %310 = vmatprep.subr.mxu0 0.0
    %311 = vmatpush2.msra.mxu0 0.0
    %312 = vmatprep.subr.mxu0 0.0
    %313 = vmatpush2.msra.mxu0 0.0
    %314 = vmatprep.subr.mxu0 0.0
    %315 = vmatpush2.msra.mxu0 0.0
    %316 = vmatprep.subr.mxu0 0.0
    %317 = vmatpush2.msra.mxu0 0.0
    %318 = vmatprep.subr.mxu0 0.0
    %319 = vmatpush2.msra.mxu0 0.0
    %320 = vmatprep.subr.mxu0 0.0
    %321 = vmatpush2.msra.mxu0 0.0
    %322 = vmatprep.subr.mxu0 0.0
    %323 = vmatpush2.msra.mxu0 0.0
    %324 = vmatprep.subr.mxu0 0.0
    %325 = vmatpush2.msra.mxu0 0.0
    %326 = vmatprep.subr.mxu0 0.0
    %327 = vmatpush2.msra.mxu0 0.0
    %328 = vmatprep.subr.mxu0 0.0
    %329 = vmatpush2.msra.mxu0 0.0
    %330 = vmatprep.subr.mxu0 0.0
    %331 = vmatpush2.msra.mxu0 0.0
    %332 = vmatprep.subr.mxu0 0.0
    %333 = vmatpush2.msra.mxu0 0.0
    %334 = vmatprep.subr.mxu0 0.0
    %335 = vmatpush2.msra.mxu0 0.0
    %336 = vmatprep.subr.mxu0 0.0
    %337 = vmatpush2.msra.mxu0 0.0
    %338 = vmatprep.mubr.f32.mxu0 0.0
    %339 = vmatmul.mubr.f32.gmra.mxu0 %v169
    %v340 = vpop.f32.mrf.mxu0
    %v341 = vadd.f32 0.0, %v340
    %v342 = vpop.f32.mrf.mxu0
    %343 = vmatprep.mubr.f32.mxu0 0.0
    %344 = vmatmul.mubr.f32.gmra.mxu0 %v172
    %v345 = vpop.f32.mrf.mxu0
    %v346 = vadd.f32 0.0, %v345
    %v347 = vpop.f32.mrf.mxu0
    %348 = vmatprep.mubr.f32.mxu0 0.0
    %349 = vmatmul.mubr.f32.gmra.mxu0 %v175
    %v350 = vpop.f32.mrf.mxu0
    %v351 = vadd.f32 0.0, %v350
    %v352 = vpop.f32.mrf.mxu0
    %353 = vmatprep.mubr.f32.mxu0 0.0
    %354 = vmatmul.mubr.f32.gmra.mxu0 %v178
    %v355 = vpop.f32.mrf.mxu0
    %v356 = vadd.f32 0.0, %v355
    %v357 = vpop.f32.mrf.mxu0
    %358 = vdwg.mxu0
    %v359 = vlaneseq
    %v360 = vshrl.u32 %v359, 7
    %v361 = vadd.s32 %v360, 8
    %v362 = vadd.s32 %v360, 16
    %v363 = vadd.s32 %v360, 24
    %vm364 = vcmp.lt.s32.totalorder %v360, 0
    %v365 = vsub.s32 0, %v360
    %v366 = vsel %vm364, %v365, %v360
    %v367 = vshrl.u32 %v366, 4
    %v368 = vand.u32 %v366, 15
    %v369 = vsub.s32 0, %v368
    %v370 = vsel %vm364, %v369, %v368
    %vm371 = vcmp.lt.s32.totalorder %v361, 0
    %v372 = vsub.s32 0, %v361
    %v373 = vsel %vm371, %v372, %v361
    %v374 = vshrl.u32 %v373, 4
    %v375 = vand.u32 %v373, 15
    %v376 = vsub.s32 0, %v375
    %v377 = vsel %vm371, %v376, %v375
    %vm378 = vcmp.lt.s32.totalorder %v362, 0
    %v379 = vsub.s32 0, %v362
    %v380 = vsel %vm378, %v379, %v362
    %v381 = vshrl.u32 %v380, 4
    %v382 = vand.u32 %v380, 15
    %v383 = vsub.s32 0, %v382
    %v384 = vsel %vm378, %v383, %v382
    %vm385 = vcmp.lt.s32.totalorder %v363, 0
    %v386 = vsub.s32 0, %v363
    %v387 = vsel %vm385, %v386, %v363
    %v388 = vshrl.u32 %v387, 4
    %v389 = vand.u32 %v387, 15
    %v390 = vsub.s32 0, %v389
    %v391 = vsel %vm385, %v390, %v389
    %vm392 = vcmp.ne.s32.totalorder %v370, 0
    %vm393 = vcmp.ne.s32.totalorder %v377, 0
    %vm394 = vcmp.ne.s32.totalorder %v384, 0
    %vm395 = vcmp.ne.s32.totalorder %v391, 0
    %vm396 = vcmp.lt.s32.totalorder %v370, 0
    %vm397 = vcmp.lt.s32.totalorder %v377, 0
    %vm398 = vcmp.lt.s32.totalorder %v384, 0
    %vm399 = vcmp.lt.s32.totalorder %v391, 0
    %vm400 = vmand %vm396, %vm392
    %vm401 = vmand %vm397, %vm393
    %vm402 = vmand %vm398, %vm394
    %vm403 = vmand %vm399, %vm395
    %v404 = vadd.s32 %v370, 16
    %v405 = vadd.s32 %v377, 16
    %v406 = vadd.s32 %v384, 16
    %v407 = vadd.s32 %v391, 16
    %v408 = vsel %vm400, %v404, %v370
    %v409 = vsel %vm401, %v405, %v377
    %v410 = vsel %vm402, %v406, %v384
    %v411 = vsel %vm403, %v407, %v391
    %v412 = vrot.slane %v247, 7
    %v413 = vrot.slane %v252, 7
    %v414 = vrot.slane %v257, 7
    %v415 = vrot.slane %v262, 7
    %vm416 = vcmp.lt.s32.totalorder %v360, 1
    %v417 = vsel %vm416, %v414, %v415
    %v418 = vsel %vm416, %v413, %v414
    %v419 = vsel %vm416, %v412, %v413
    %v420 = vsel %vm416, %v415, %v412
    %v421 = vrot.slane %v341, 1
    %v422 = vrot.slane %v346, 1
    %v423 = vrot.slane %v351, 1
    %v424 = vrot.slane %v356, 1
    %vm425 = vcmp.lt.s32.totalorder %v360, 7
    %v426 = vsel %vm425, %v423, %v424
    %v427 = vsel %vm425, %v422, %v423
    %v428 = vsel %vm425, %v421, %v422
    %v429 = vsel %vm425, %v424, %v421
    %vm430 = vcmp.eq.s32.totalorder %v408, 0
    %vm431 = vcmp.eq.s32.totalorder %v409, 0
    %vm432 = vcmp.eq.s32.totalorder %v410, 0
    %vm433 = vcmp.eq.s32.totalorder %v411, 0
    %v434 = vsel %vm430, 0.0, %v420
    %v435 = vsel %vm431, 0.0, %v419
    %v436 = vsel %vm432, 0.0, %v418
    %v437 = vsel %vm433, 0.0, %v417
    %vm438 = vcmp.eq.s32.totalorder %v408, 15
    %vm439 = vcmp.eq.s32.totalorder %v409, 15
    %vm440 = vcmp.eq.s32.totalorder %v410, 15
    %vm441 = vcmp.eq.s32.totalorder %v411, 15
    %v442 = vsel %vm438, 0.0, %v428
    %v443 = vsel %vm439, 0.0, %v427
    %v444 = vsel %vm440, 0.0, %v426
    %v445 = vsel %vm441, 0.0, %v429
    %446 = vmatprep.subr.mxu0 0.0
    %447 = vmatpush1.msra.mxu0 0.0
    %448 = vmatprep.subr.mxu0 0.0
    %449 = vmatpush1.msra.mxu0 0.0
    %450 = vmatprep.subr.mxu0 0.0
    %451 = vmatpush1.msra.mxu0 0.0
    %452 = vmatprep.subr.mxu0 0.0
    %453 = vmatpush1.msra.mxu0 0.0
    %454 = vmatprep.subr.mxu0 0.0
    %455 = vmatpush1.msra.mxu0 0.0
    %456 = vmatprep.subr.mxu0 0.0
    %457 = vmatpush1.msra.mxu0 0.0
    %458 = vmatprep.subr.mxu0 0.0
    %459 = vmatpush1.msra.mxu0 0.0
    %460 = vmatprep.subr.mxu0 0.0
    %461 = vmatpush1.msra.mxu0 0.0
    %462 = vmatprep.subr.mxu0 0.0
    %463 = vmatpush1.msra.mxu0 %v159
    %464 = vmatprep.subr.mxu0 0.0
    %465 = vmatpush1.msra.mxu0 %v158
    %466 = vmatprep.subr.mxu0 0.0
    %467 = vmatpush1.msra.mxu0 %v157
    %468 = vmatprep.subr.mxu0 0.0
    %469 = vmatpush1.msra.mxu0 %v156
    %470 = vmatprep.subr.mxu0 0.0
    %471 = vmatpush1.msra.mxu0 %v155
    %472 = vmatprep.subr.mxu0 0.0
    %473 = vmatpush1.msra.mxu0 %v154
    %474 = vmatprep.subr.mxu0 0.0
    %475 = vmatpush1.msra.mxu0 %v153
    %476 = vmatprep.subr.mxu0 0.0
    %477 = vmatpush1.msra.mxu0 %v152
    %478 = vmatprep.subr.mxu0 0.0
    %479 = vmatpush2.msra.mxu0 0.0
    %480 = vmatprep.subr.mxu0 0.0
    %481 = vmatpush2.msra.mxu0 0.0
    %482 = vmatprep.subr.mxu0 0.0
    %483 = vmatpush2.msra.mxu0 0.0
    %484 = vmatprep.subr.mxu0 0.0
    %485 = vmatpush2.msra.mxu0 0.0
    %486 = vmatprep.subr.mxu0 0.0
    %487 = vmatpush2.msra.mxu0 0.0
    %488 = vmatprep.subr.mxu0 0.0
    %489 = vmatpush2.msra.mxu0 0.0
    %490 = vmatprep.subr.mxu0 0.0
    %491 = vmatpush2.msra.mxu0 0.0
    %492 = vmatprep.subr.mxu0 0.0
    %493 = vmatpush2.msra.mxu0 0.0
    %494 = vmatprep.subr.mxu0 0.0
    %495 = vmatpush2.msra.mxu0 0.0
    %496 = vmatprep.subr.mxu0 0.0
    %497 = vmatpush2.msra.mxu0 0.0
    %498 = vmatprep.subr.mxu0 0.0
    %499 = vmatpush2.msra.mxu0 0.0
    %500 = vmatprep.subr.mxu0 0.0
    %501 = vmatpush2.msra.mxu0 0.0
    %502 = vmatprep.subr.mxu0 0.0
    %503 = vmatpush2.msra.mxu0 0.0
    %504 = vmatprep.subr.mxu0 0.0
    %505 = vmatpush2.msra.mxu0 0.0
    %506 = vmatprep.subr.mxu0 0.0
    %507 = vmatpush2.msra.mxu0 0.0
    %508 = vmatprep.subr.mxu0 0.0
    %509 = vmatpush2.msra.mxu0 0.0
    %510 = vmatprep.mubr.f32.mxu0 0.0
    %511 = vmatmul.mubr.f32.gmra.mxu0 %v169
    %v512 = vpop.f32.mrf.mxu0
    %v513 = vadd.f32 %v434, %v512
    %v514 = vpop.f32.mrf.mxu0
    %515 = vmatprep.mubr.f32.mxu0 0.0
    %516 = vmatmul.mubr.f32.gmra.mxu0 %v172
    %v517 = vpop.f32.mrf.mxu0
    %v518 = vadd.f32 %v435, %v517
    %v519 = vpop.f32.mrf.mxu0
    %520 = vmatprep.mubr.f32.mxu0 0.0
    %521 = vmatmul.mubr.f32.gmra.mxu0 %v175
    %v522 = vpop.f32.mrf.mxu0
    %v523 = vadd.f32 %v436, %v522
    %v524 = vpop.f32.mrf.mxu0
    %525 = vmatprep.mubr.f32.mxu0 0.0
    %526 = vmatmul.mubr.f32.gmra.mxu0 %v178
    %v527 = vpop.f32.mrf.mxu0
    %v528 = vadd.f32 %v437, %v527
    %v529 = vpop.f32.mrf.mxu0
    %530 = vdwg.mxu0
    %v531 = vadd.f32 %v513, %v442
    %v532 = vadd.f32 %v518, %v443
    %v533 = vadd.f32 %v523, %v444
    %v534 = vadd.f32 %v528, %v445
    %v535 = vld [vmem:[%s2] sm:$0x1]
    %v537 = vlaneseq
    %v538 = vshrl.u32 %v537, 7
    %v539 = vsub.s32 0, %v538
    %v540 = vrot.slane %v535, %v539
    %v542 = vadd.f32 %v531, %v540
    %v543 = vadd.f32 %v532, %v540
    %v544 = vadd.f32 %v533, %v540
    %v545 = vadd.f32 %v534, %v540
    %v546 = vmax.f32 %v542, 0.0
    %v547 = vmax.f32 %v543, 0.0
    %v548 = vmax.f32 %v544, 0.0
    %v549 = vmax.f32 %v545, 0.0
    %s550 = scalar_lea.vmem %s3, 128
    %v551 = vld [vmem:[%s550] sm:$0xff]
    %v552 = vld [vmem:[%s550 + $0x8] sm:$0xff]
    %v553 = vld [vmem:[%s550 + $0x10] sm:$0xff]
    %v554 = vld [vmem:[%s550 + $0x18] sm:$0xff]
    %v555 = vld [vmem:[%s550 + $0x20] sm:$0xff]
    %v556 = vld [vmem:[%s550 + $0x28] sm:$0xff]
    %v557 = vld [vmem:[%s550 + $0x30] sm:$0xff]
    %v558 = vld [vmem:[%s550 + $0x38] sm:$0xff]
    %v559 = vld [vmem:[%s550 + $0x40] sm:$0xff]
    %v560 = vld [vmem:[%s550 + $0x48] sm:$0xff]
    %v561 = vld [vmem:[%s550 + $0x50] sm:$0xff]
    %v562 = vld [vmem:[%s550 + $0x58] sm:$0xff]
    %v563 = vld [vmem:[%s550 + $0x60] sm:$0xff]
    %v564 = vld [vmem:[%s550 + $0x68] sm:$0xff]
    %v565 = vld [vmem:[%s550 + $0x70] sm:$0xff]
    %v566 = vld [vmem:[%s550 + $0x78] sm:$0xff]
    %v567 = vld [vmem:[%s3] sm:$0xff]
    %v568 = vld [vmem:[%s3 + $0x8] sm:$0xff]
    %v569 = vld [vmem:[%s3 + $0x10] sm:$0xff]
    %v570 = vld [vmem:[%s3 + $0x18] sm:$0xff]
    %v571 = vld [vmem:[%s3 + $0x20] sm:$0xff]
    %v572 = vld [vmem:[%s3 + $0x28] sm:$0xff]
    %v573 = vld [vmem:[%s3 + $0x30] sm:$0xff]
    %v574 = vld [vmem:[%s3 + $0x38] sm:$0xff]
    %v575 = vld [vmem:[%s3 + $0x40] sm:$0xff]
    %v576 = vld [vmem:[%s3 + $0x48] sm:$0xff]
    %v577 = vld [vmem:[%s3 + $0x50] sm:$0xff]
    %v578 = vld [vmem:[%s3 + $0x58] sm:$0xff]
    %v579 = vld [vmem:[%s3 + $0x60] sm:$0xff]
    %v580 = vld [vmem:[%s3 + $0x68] sm:$0xff]
    %v581 = vld [vmem:[%s3 + $0x70] sm:$0xff]
    %v582 = vld [vmem:[%s3 + $0x78] sm:$0xff]
    %583 = vmatprep.subr.mxu0 0.0
    %584 = vmatpush1.msra.mxu0 %v582
    %585 = vmatprep.subr.mxu0 0.0
    %586 = vmatpush1.msra.mxu0 %v581
    %587 = vmatprep.subr.mxu0 0.0
    %588 = vmatpush1.msra.mxu0 %v580
    %589 = vmatprep.subr.mxu0 0.0
    %590 = vmatpush1.msra.mxu0 %v579
    %591 = vmatprep.subr.mxu0 0.0
    %592 = vmatpush1.msra.mxu0 %v578
    %593 = vmatprep.subr.mxu0 0.0
    %594 = vmatpush1.msra.mxu0 %v577
    %595 = vmatprep.subr.mxu0 0.0
    %596 = vmatpush1.msra.mxu0 %v576
    %597 = vmatprep.subr.mxu0 0.0
    %598 = vmatpush1.msra.mxu0 %v575
    %599 = vmatprep.subr.mxu0 0.0
    %600 = vmatpush1.msra.mxu0 %v574
    %601 = vmatprep.subr.mxu0 0.0
    %602 = vmatpush1.msra.mxu0 %v573
    %603 = vmatprep.subr.mxu0 0.0
    %604 = vmatpush1.msra.mxu0 %v572
    %605 = vmatprep.subr.mxu0 0.0
    %606 = vmatpush1.msra.mxu0 %v571
    %607 = vmatprep.subr.mxu0 0.0
    %608 = vmatpush1.msra.mxu0 %v570
    %609 = vmatprep.subr.mxu0 0.0
    %610 = vmatpush1.msra.mxu0 %v569
    %611 = vmatprep.subr.mxu0 0.0
    %612 = vmatpush1.msra.mxu0 %v568
    %613 = vmatprep.subr.mxu0 0.0
    %614 = vmatpush1.msra.mxu0 %v567
    %615 = vmatprep.subr.mxu0 0.0
    %616 = vmatpush2.msra.mxu0 0.0
    %617 = vmatprep.subr.mxu0 0.0
    %618 = vmatpush2.msra.mxu0 0.0
    %619 = vmatprep.subr.mxu0 0.0
    %620 = vmatpush2.msra.mxu0 0.0
    %621 = vmatprep.subr.mxu0 0.0
    %622 = vmatpush2.msra.mxu0 0.0
    %623 = vmatprep.subr.mxu0 0.0
    %624 = vmatpush2.msra.mxu0 0.0
    %625 = vmatprep.subr.mxu0 0.0
    %626 = vmatpush2.msra.mxu0 0.0
    %627 = vmatprep.subr.mxu0 0.0
    %628 = vmatpush2.msra.mxu0 0.0
    %629 = vmatprep.subr.mxu0 0.0
    %630 = vmatpush2.msra.mxu0 0.0
    %631 = vmatprep.subr.mxu0 0.0
    %632 = vmatpush2.msra.mxu0 0.0
    %633 = vmatprep.subr.mxu0 0.0
    %634 = vmatpush2.msra.mxu0 0.0
    %635 = vmatprep.subr.mxu0 0.0
    %636 = vmatpush2.msra.mxu0 0.0
    %637 = vmatprep.subr.mxu0 0.0
    %638 = vmatpush2.msra.mxu0 0.0
    %639 = vmatprep.subr.mxu0 0.0
    %640 = vmatpush2.msra.mxu0 0.0
    %641 = vmatprep.subr.mxu0 0.0
    %642 = vmatpush2.msra.mxu0 0.0
    %643 = vmatprep.subr.mxu0 0.0
    %644 = vmatpush2.msra.mxu0 0.0
    %645 = vmatprep.subr.mxu0 0.0
    %646 = vmatpush2.msra.mxu0 0.0
    %647 = vmatprep.mubr.f32.mxu0 0.0
    %648 = vmatmul.mubr.f32.gmra.mxu0 %v546
    %v649 = vpop.f32.mrf.mxu0
    %v650 = vadd.f32 0.0, %v649
    %v651 = vpop.f32.mrf.mxu0
    %652 = vmatprep.mubr.f32.mxu0 0.0
    %653 = vmatmul.mubr.f32.gmra.mxu0 %v547
    %v654 = vpop.f32.mrf.mxu0
    %v655 = vadd.f32 0.0, %v654
    %v656 = vpop.f32.mrf.mxu0
    %657 = vmatprep.mubr.f32.mxu0 0.0
    %658 = vmatmul.mubr.f32.gmra.mxu0 %v548
    %v659 = vpop.f32.mrf.mxu0
    %v660 = vadd.f32 0.0, %v659
    %v661 = vpop.f32.mrf.mxu0
    %662 = vmatprep.mubr.f32.mxu0 0.0
    %663 = vmatmul.mubr.f32.gmra.mxu0 %v549
    %v664 = vpop.f32.mrf.mxu0
    %v665 = vadd.f32 0.0, %v664
    %v666 = vpop.f32.mrf.mxu0
    %667 = vdwg.mxu0
    %s668 = scalar_lea.vmem %s3, 256
    %v669 = vld [vmem:[%s668] sm:$0xff]
    %v670 = vld [vmem:[%s668 + $0x8] sm:$0xff]
    %v671 = vld [vmem:[%s668 + $0x10] sm:$0xff]
    %v672 = vld [vmem:[%s668 + $0x18] sm:$0xff]
    %v673 = vld [vmem:[%s668 + $0x20] sm:$0xff]
    %v674 = vld [vmem:[%s668 + $0x28] sm:$0xff]
    %v675 = vld [vmem:[%s668 + $0x30] sm:$0xff]
    %v676 = vld [vmem:[%s668 + $0x38] sm:$0xff]
    %v677 = vld [vmem:[%s668 + $0x40] sm:$0xff]
    %v678 = vld [vmem:[%s668 + $0x48] sm:$0xff]
    %v679 = vld [vmem:[%s668 + $0x50] sm:$0xff]
    %v680 = vld [vmem:[%s668 + $0x58] sm:$0xff]
    %v681 = vld [vmem:[%s668 + $0x60] sm:$0xff]
    %v682 = vld [vmem:[%s668 + $0x68] sm:$0xff]
    %v683 = vld [vmem:[%s668 + $0x70] sm:$0xff]
    %v684 = vld [vmem:[%s668 + $0x78] sm:$0xff]
    %685 = vmatprep.subr.mxu0 0.0
    %686 = vmatpush1.msra.mxu0 %v684
    %687 = vmatprep.subr.mxu0 0.0
    %688 = vmatpush1.msra.mxu0 %v683
    %689 = vmatprep.subr.mxu0 0.0
    %690 = vmatpush1.msra.mxu0 %v682
    %691 = vmatprep.subr.mxu0 0.0
    %692 = vmatpush1.msra.mxu0 %v681
    %693 = vmatprep.subr.mxu0 0.0
    %694 = vmatpush1.msra.mxu0 %v680
    %695 = vmatprep.subr.mxu0 0.0
    %696 = vmatpush1.msra.mxu0 %v679
    %697 = vmatprep.subr.mxu0 0.0
    %698 = vmatpush1.msra.mxu0 %v678
    %699 = vmatprep.subr.mxu0 0.0
    %700 = vmatpush1.msra.mxu0 %v677
    %701 = vmatprep.subr.mxu0 0.0
    %702 = vmatpush1.msra.mxu0 %v676
    %703 = vmatprep.subr.mxu0 0.0
    %704 = vmatpush1.msra.mxu0 %v675
    %705 = vmatprep.subr.mxu0 0.0
    %706 = vmatpush1.msra.mxu0 %v674
    %707 = vmatprep.subr.mxu0 0.0
    %708 = vmatpush1.msra.mxu0 %v673
    %709 = vmatprep.subr.mxu0 0.0
    %710 = vmatpush1.msra.mxu0 %v672
    %711 = vmatprep.subr.mxu0 0.0
    %712 = vmatpush1.msra.mxu0 %v671
    %713 = vmatprep.subr.mxu0 0.0
    %714 = vmatpush1.msra.mxu0 %v670
    %715 = vmatprep.subr.mxu0 0.0
    %716 = vmatpush1.msra.mxu0 %v669
    %717 = vmatprep.subr.mxu0 0.0
    %718 = vmatpush2.msra.mxu0 0.0
    %719 = vmatprep.subr.mxu0 0.0
    %720 = vmatpush2.msra.mxu0 0.0
    %721 = vmatprep.subr.mxu0 0.0
    %722 = vmatpush2.msra.mxu0 0.0
    %723 = vmatprep.subr.mxu0 0.0
    %724 = vmatpush2.msra.mxu0 0.0
    %725 = vmatprep.subr.mxu0 0.0
    %726 = vmatpush2.msra.mxu0 0.0
    %727 = vmatprep.subr.mxu0 0.0
    %728 = vmatpush2.msra.mxu0 0.0
    %729 = vmatprep.subr.mxu0 0.0
    %730 = vmatpush2.msra.mxu0 0.0
    %731 = vmatprep.subr.mxu0 0.0
    %732 = vmatpush2.msra.mxu0 0.0
    %733 = vmatprep.subr.mxu0 0.0
    %734 = vmatpush2.msra.mxu0 0.0
    %735 = vmatprep.subr.mxu0 0.0
    %736 = vmatpush2.msra.mxu0 0.0
    %737 = vmatprep.subr.mxu0 0.0
    %738 = vmatpush2.msra.mxu0 0.0
    %739 = vmatprep.subr.mxu0 0.0
    %740 = vmatpush2.msra.mxu0 0.0
    %741 = vmatprep.subr.mxu0 0.0
    %742 = vmatpush2.msra.mxu0 0.0
    %743 = vmatprep.subr.mxu0 0.0
    %744 = vmatpush2.msra.mxu0 0.0
    %745 = vmatprep.subr.mxu0 0.0
    %746 = vmatpush2.msra.mxu0 0.0
    %747 = vmatprep.subr.mxu0 0.0
    %748 = vmatpush2.msra.mxu0 0.0
    %749 = vmatprep.mubr.f32.mxu0 0.0
    %750 = vmatmul.mubr.f32.gmra.mxu0 %v546
    %v751 = vpop.f32.mrf.mxu0
    %v752 = vadd.f32 0.0, %v751
    %v753 = vpop.f32.mrf.mxu0
    %754 = vmatprep.mubr.f32.mxu0 0.0
    %755 = vmatmul.mubr.f32.gmra.mxu0 %v547
    %v756 = vpop.f32.mrf.mxu0
    %v757 = vadd.f32 0.0, %v756
    %v758 = vpop.f32.mrf.mxu0
    %759 = vmatprep.mubr.f32.mxu0 0.0
    %760 = vmatmul.mubr.f32.gmra.mxu0 %v548
    %v761 = vpop.f32.mrf.mxu0
    %v762 = vadd.f32 0.0, %v761
    %v763 = vpop.f32.mrf.mxu0
    %764 = vmatprep.mubr.f32.mxu0 0.0
    %765 = vmatmul.mubr.f32.gmra.mxu0 %v549
    %v766 = vpop.f32.mrf.mxu0
    %v767 = vadd.f32 0.0, %v766
    %v768 = vpop.f32.mrf.mxu0
    %769 = vdwg.mxu0
    %v770 = vrot.slane %v650, 7
    %v771 = vrot.slane %v655, 7
    %v772 = vrot.slane %v660, 7
    %v773 = vrot.slane %v665, 7
    %v774 = vsel %vm416, %v772, %v773
    %v775 = vsel %vm416, %v771, %v772
    %v776 = vsel %vm416, %v770, %v771
    %v777 = vsel %vm416, %v773, %v770
    %v778 = vrot.slane %v752, 1
    %v779 = vrot.slane %v757, 1
    %v780 = vrot.slane %v762, 1
    %v781 = vrot.slane %v767, 1
    %v782 = vsel %vm425, %v780, %v781
    %v783 = vsel %vm425, %v779, %v780
    %v784 = vsel %vm425, %v778, %v779
    %v785 = vsel %vm425, %v781, %v778
    %v786 = vsel %vm430, 0.0, %v777
    %v787 = vsel %vm431, 0.0, %v776
    %v788 = vsel %vm432, 0.0, %v775
    %v789 = vsel %vm433, 0.0, %v774
    %v790 = vsel %vm438, 0.0, %v784
    %v791 = vsel %vm439, 0.0, %v783
    %v792 = vsel %vm440, 0.0, %v782
    %v793 = vsel %vm441, 0.0, %v785
    %794 = vmatprep.subr.mxu0 0.0
    %795 = vmatpush1.msra.mxu0 %v566
    %796 = vmatprep.subr.mxu0 0.0
    %797 = vmatpush1.msra.mxu0 %v565
    %798 = vmatprep.subr.mxu0 0.0
    %799 = vmatpush1.msra.mxu0 %v564
    %800 = vmatprep.subr.mxu0 0.0
    %801 = vmatpush1.msra.mxu0 %v563
    %802 = vmatprep.subr.mxu0 0.0
    %803 = vmatpush1.msra.mxu0 %v562
    %804 = vmatprep.subr.mxu0 0.0
    %805 = vmatpush1.msra.mxu0 %v561
    %806 = vmatprep.subr.mxu0 0.0
    %807 = vmatpush1.msra.mxu0 %v560
    %808 = vmatprep.subr.mxu0 0.0
    %809 = vmatpush1.msra.mxu0 %v559
    %810 = vmatprep.subr.mxu0 0.0
    %811 = vmatpush1.msra.mxu0 %v558
    %812 = vmatprep.subr.mxu0 0.0
    %813 = vmatpush1.msra.mxu0 %v557
    %814 = vmatprep.subr.mxu0 0.0
    %815 = vmatpush1.msra.mxu0 %v556
    %816 = vmatprep.subr.mxu0 0.0
    %817 = vmatpush1.msra.mxu0 %v555
    %818 = vmatprep.subr.mxu0 0.0
    %819 = vmatpush1.msra.mxu0 %v554
    %820 = vmatprep.subr.mxu0 0.0
    %821 = vmatpush1.msra.mxu0 %v553
    %822 = vmatprep.subr.mxu0 0.0
    %823 = vmatpush1.msra.mxu0 %v552
    %824 = vmatprep.subr.mxu0 0.0
    %825 = vmatpush1.msra.mxu0 %v551
    %826 = vmatprep.subr.mxu0 0.0
    %827 = vmatpush2.msra.mxu0 0.0
    %828 = vmatprep.subr.mxu0 0.0
    %829 = vmatpush2.msra.mxu0 0.0
    %830 = vmatprep.subr.mxu0 0.0
    %831 = vmatpush2.msra.mxu0 0.0
    %832 = vmatprep.subr.mxu0 0.0
    %833 = vmatpush2.msra.mxu0 0.0
    %834 = vmatprep.subr.mxu0 0.0
    %835 = vmatpush2.msra.mxu0 0.0
    %836 = vmatprep.subr.mxu0 0.0
    %837 = vmatpush2.msra.mxu0 0.0
    %838 = vmatprep.subr.mxu0 0.0
    %839 = vmatpush2.msra.mxu0 0.0
    %840 = vmatprep.subr.mxu0 0.0
    %841 = vmatpush2.msra.mxu0 0.0
    %842 = vmatprep.subr.mxu0 0.0
    %843 = vmatpush2.msra.mxu0 0.0
    %844 = vmatprep.subr.mxu0 0.0
    %845 = vmatpush2.msra.mxu0 0.0
    %846 = vmatprep.subr.mxu0 0.0
    %847 = vmatpush2.msra.mxu0 0.0
    %848 = vmatprep.subr.mxu0 0.0
    %849 = vmatpush2.msra.mxu0 0.0
    %850 = vmatprep.subr.mxu0 0.0
    %851 = vmatpush2.msra.mxu0 0.0
    %852 = vmatprep.subr.mxu0 0.0
    %853 = vmatpush2.msra.mxu0 0.0
    %854 = vmatprep.subr.mxu0 0.0
    %855 = vmatpush2.msra.mxu0 0.0
    %856 = vmatprep.subr.mxu0 0.0
    %857 = vmatpush2.msra.mxu0 0.0
    %858 = vmatprep.mubr.f32.mxu0 0.0
    %859 = vmatmul.mubr.f32.gmra.mxu0 %v546
    %v860 = vpop.f32.mrf.mxu0
    %v861 = vadd.f32 %v786, %v860
    %v862 = vpop.f32.mrf.mxu0
    %863 = vmatprep.mubr.f32.mxu0 0.0
    %864 = vmatmul.mubr.f32.gmra.mxu0 %v547
    %v865 = vpop.f32.mrf.mxu0
    %v866 = vadd.f32 %v787, %v865
    %v867 = vpop.f32.mrf.mxu0
    %868 = vmatprep.mubr.f32.mxu0 0.0
    %869 = vmatmul.mubr.f32.gmra.mxu0 %v548
    %v870 = vpop.f32.mrf.mxu0
    %v871 = vadd.f32 %v788, %v870
    %v872 = vpop.f32.mrf.mxu0
    %873 = vmatprep.mubr.f32.mxu0 0.0
    %874 = vmatmul.mubr.f32.gmra.mxu0 %v549
    %v875 = vpop.f32.mrf.mxu0
    %v876 = vadd.f32 %v789, %v875
    %v877 = vpop.f32.mrf.mxu0
    %878 = vdwg.mxu0
    %v879 = vadd.f32 %v861, %v790
    %v880 = vadd.f32 %v866, %v791
    %v881 = vadd.f32 %v871, %v792
    %v882 = vadd.f32 %v876, %v793
    %v883 = vld [vmem:[%s4] sm:$0x1]
    %v885 = vlaneseq
    %v886 = vshrl.u32 %v885, 7
    %v887 = vsub.s32 0, %v886
    %v888 = vrot.slane %v883, %v887
    %v890 = vadd.f32 %v879, %v888
    %v891 = vadd.f32 %v880, %v888
    %v892 = vadd.f32 %v881, %v888
    %v893 = vadd.f32 %v882, %v888
    %v894 = vadd.f32 %v890, %v129
    %v895 = vadd.f32 %v891, %v134
    %v896 = vadd.f32 %v892, %v139
    %v897 = vadd.f32 %v893, %v144
    %898 = vst [vmem:[%s6] sm:$0xff] %v894
    %899 = vst [vmem:[%s6 + $0x8] sm:$0xff] %v895
    %900 = vst [vmem:[%s6 + $0x10] sm:$0xff] %v896
    %901 = vst [vmem:[%s6 + $0x18] sm:$0xff] %v897
    // Predicated region
    $region30: #{resblock_forward.1} parent=1 // pred_check
      _
    $region31: #{resblock_forward.1} parent=1 // pred_check_branch
      %903 = sbr.rel (0) target = $region33
    $region32: #{resblock_forward.1} parent=1 // pred_region
      _
    $region33: #{resblock_forward.1} parent=1 // pred_fallthru
      _
    // Predicated region
    $region34: #{resblock_forward.1} parent=1 // pred_check
      _
    $region35: #{resblock_forward.1} parent=1 // pred_check_branch
      %905 = sbr.rel (0) target = $region37
    $region36: #{resblock_forward.1} parent=1 // pred_region
      _
    $region37: #{resblock_forward.1} parent=1 // pred_fallthru
      _
    %906 = vsyncpa [#allocation3], 1

</llo_original>
